<compile_context>
chip_gen: v5e
topology: v5e:2x2
jax: 0.10.0
libtpu: 0.0.40
codegen_flags: <defaults>
</compile_context>

<pallas_src>
import functools

import jax
import jax.numpy as jnp
from jax import lax
from jax.experimental import pallas as pl
from jax.experimental.pallas import tpu as pltpu


def _round_up(x, m):
    return ((x + m - 1) // m) * m


# ---------------------------------------------------------------------------
# Kernels
# ---------------------------------------------------------------------------
def _decomp_kernel_lanepacked(x_ref, res_ref, mean_ref, *, L, C, pad, inv_k):
    """Block (TB, L*C): time*channels packed dense on the lane axis.

    window_sum[t] = sum_{d=-pad..pad} x[clamp(t+d, 0, L-1)], built from
    lane rolls by +-C (one time step) with an edge-hold select at t=0 / t=L-1.
    """
    xf = x_ref[...].astype(jnp.float32)                    # (TB, N)
    _, N = xf.shape
    flat = lax.broadcasted_iota(jnp.int32, (1, N), 1)       # flat index t*C + c
    is_last = jnp.broadcast_to(flat >= (L - 1) * C, xf.shape)   # t == L-1
    is_first = jnp.broadcast_to(flat < C, xf.shape)             # t == 0

    acc = xf
    fwd = xf      # fwd[t] = x[min(t+d, L-1)]
    bwd = xf      # bwd[t] = x[max(t-d, 0)]
    for _ in range(pad):
        fwd = jnp.where(is_last, fwd, pltpu.roll(fwd, N - C, axis=1))
        bwd = jnp.where(is_first, bwd, pltpu.roll(bwd, C, axis=1))
        acc = acc + fwd + bwd

    mean = acc * inv_k
    res_ref[...] = (xf - mean).astype(res_ref.dtype)
    mean_ref[...] = mean.astype(mean_ref.dtype)


def _decomp_kernel_widechan(x_ref, res_ref, mean_ref, *, pad, inv_k):
    """Block (TB, L, TC): time on sublanes, >=128 channels dense on lanes."""
    xf = x_ref[...].astype(jnp.float32)                     # (TB, L, TC)
    _, L, _ = xf.shape
    t = lax.broadcasted_iota(jnp.int32, (1, L, 1), 1)
    is_last = jnp.broadcast_to(t == (L - 1), xf.shape)
    is_first = jnp.broadcast_to(t == 0, xf.shape)

    acc = xf
    fwd = xf
    bwd = xf
    for _ in range(pad):
        fwd = jnp.where(is_last, fwd, pltpu.roll(fwd, L - 1, axis=1))
        bwd = jnp.where(is_first, bwd, pltpu.roll(bwd, 1, axis=1))
        acc = acc + fwd + bwd

    mean = acc * inv_k
    res_ref[...] = (xf - mean).astype(res_ref.dtype)
    mean_ref[...] = mean.astype(mean_ref.dtype)


# ---------------------------------------------------------------------------
# VMEM budgeting / tile selection
# ---------------------------------------------------------------------------
_MIN_VMEM_LIMIT = 32 * 1024 * 1024


def _pick_vmem_limit():
    """Generation-aware scoped-VMEM limit: ~half the physical capacity,
    clamped to [32 MiB, 96 MiB].  128-MiB parts (v5e/v6e) -> 64 MiB,
    64-MiB parts (v7x) -> 32 MiB.  Falls back conservatively."""
    cap = None
    try:
        info = pltpu.get_tpu_info()
        for name in ("vmem_capacity_bytes", "vmem_bytes", "vmem_size_bytes"):
            cap = getattr(info, name, None)
            if cap:
                break
    except Exception:
        cap = None
    if not cap:
        cap = 64 * 1024 * 1024  # assume the smallest (v7x) if unknown
    return int(max(_MIN_VMEM_LIMIT, min(int(cap) // 2, 96 * 1024 * 1024)))


def _choose_batch_tile(B, row_bytes, block_budget):
    """Pick TB for a 2-D (TB, N) block.  TB must be a multiple of 8 or == B
    (sublane rule).  Prefer the largest tile that fits the padded-VMEM budget
    while still giving >= 2 grid steps (keeps both v7x TensorCores busy)."""
    cap_rows = block_budget // max(row_bytes, 1)           # padded sublane rows
    cands = sorted(set([B]) | set(range(8, B, 8)))
    feasible = [tb for tb in cands if _round_up(tb, 8) <= cap_rows]
    if not feasible:
        return B if B < 8 else 8                            # minimal legal tile
    multi = [tb for tb in feasible if -(-B // tb) >= 2]
    pool = multi if multi else feasible
    return max(pool)


# ---------------------------------------------------------------------------
# Wrapper
# ---------------------------------------------------------------------------
def series_decomp(x, kernel_size):
    """x: (B, L, C).  Returns (res, moving_mean), each (B, L, C)."""
    B, L, C = x.shape
    assert kernel_size % 2 == 1, "kernel_size must be odd (DLinear convention)"
    pad = (kernel_size - 1) // 2
    inv_k = 1.0 / kernel_size
    dtype = x.dtype

    vmem_limit = _pick_vmem_limit()
    # One padded f32 block; ~14 block-sized live buffers (2x-buffered input,
    # 2 outputs x 2 buffers, ~8 in-kernel f32/bool temps) must fit the limit.
    block_budget = vmem_limit // 16
    cparams = lambda sem: pltpu.CompilerParams(                       # noqa: E731
        dimension_semantics=sem, vmem_limit_bytes=vmem_limit)

    if C < 128:
        # --- lane-packed path: view (B, L, C) as (B, L*C), free reshape -----
        N = L * C
        row_bytes = _round_up(N, 128) * 4
        TB = _choose_batch_tile(B, row_bytes, block_budget)
        kernel = functools.partial(_decomp_kernel_lanepacked,
                                   L=L, C=C, pad=pad, inv_k=inv_k)
        blk = pl.BlockSpec((TB, N), lambda b: (b, 0))
        res2, mean2 = pl.pallas_call(
            kernel,
            out_shape=(jax.ShapeDtypeStruct((B, N), dtype),
                       jax.ShapeDtypeStruct((B, N), dtype)),
            grid_spec=pltpu.PrefetchScalarGridSpec(
                num_scalar_prefetch=0,
                grid=(pl.cdiv(B, TB),),
                in_specs=[blk],
                out_specs=(blk, blk)),
            compiler_params=cparams(("parallel",)),
        )(x.reshape(B, N))
        return res2.reshape(B, L, C), mean2.reshape(B, L, C)

    # --- wide-channel path: C itself is lane-dense -------------------------
    TB = B if B <= 8 else 8
    base = TB * _round_up(L, 8) * 4                    # block bytes per lane
    if C % 128 == 0:
        groups_total = C // 128
        max_groups = max(1, block_budget // max(base * 128, 1))
        groups = max(1, min(groups_total, max_groups))
        # Keep >= 2 total grid steps (two v7x TensorCores) when possible.
        if groups == groups_total and groups_total > 1 and -(-B // TB) == 1:
            groups = max(1, groups_total // 2)
        TC = 128 * groups
    else:
        TC = C                                          # must equal full dim
    kernel = functools.partial(_decomp_kernel_widechan, pad=pad, inv_k=inv_k)
    blk = pl.BlockSpec((TB, L, TC), lambda b, c: (b, 0, c))
    res3, mean3 = pl.pallas_call(
        kernel,
        out_shape=(jax.ShapeDtypeStruct((B, L, C), dtype),
                   jax.ShapeDtypeStruct((B, L, C), dtype)),
        grid_spec=pltpu.PrefetchScalarGridSpec(
            num_scalar_prefetch=0,
            grid=(pl.cdiv(B, TB), pl.cdiv(C, TC)),
            in_specs=[blk],
            out_specs=(blk, blk)),
        compiler_params=cparams(("parallel", "parallel")),
    )(x)
    return res3, mean3


# ---------------------------------------------------------------------------
# Pure-JAX reference mirroring the PyTorch code.
# ---------------------------------------------------------------------------
def _reference_series_decomp(x, kernel_size):
    pad = (kernel_size - 1) // 2
    front = jnp.repeat(x[:, 0:1, :], pad, axis=1)
    end = jnp.repeat(x[:, -1:, :], pad, axis=1)
    xp = jnp.concatenate([front, x, end], axis=1)          # (B, L+2p, C)
    L = x.shape[1]
    windows = jnp.stack([xp[:, s:s + L, :] for s in range(kernel_size)], axis=0)
    mean = jnp.mean(windows, axis=0)
    return x - mean, mean


def _check(x, ks, atol=2e-5, rtol=2e-5):
    res, mean = series_decomp(x, ks)
    jax.block_until_ready((res, mean))
    res_ref, mean_ref = _reference_series_decomp(x, ks)
    assert res.shape == x.shape and mean.shape == x.shape
    assert jnp.allclose(res, res_ref, atol=atol, rtol=rtol), "res mismatch"
    assert jnp.allclose(mean, mean_ref, atol=atol, rtol=rtol), "mean mismatch"


if __name__ == "__main__":
    key = jax.random.PRNGKey(0)
    k1, k2, k3 = jax.random.split(key, 3)

    # 1) Small C (typical DLinear variate count), unaligned lane width.
    x1 = jax.random.normal(k1, (2, 16, 7), dtype=jnp.float32)
    _check(x1, 5)

    # 2) DLinear default kernel_size=25, TB=8 with a ragged last batch block.
    x2 = jax.random.normal(k2, (10, 32, 8), dtype=jnp.float32)
    _check(x2, 25)

    # 3) Wide-channel path (C >= 128): time shifts along the sublane axis.
    x3 = jax.random.normal(k3, (2, 16, 128), dtype=jnp.float32)
    _check(x3, 5)

    print("KERNEL_OK")
</pallas_src>

<mosaic_0001>
module attributes {stable_mosaic.version = 11 : i64} {
  func.func @_decomp_kernel_lanepacked(%arg0: i32, %arg1: memref<2x112xf32, #tpu.memory_space<vmem>>, %arg2: memref<2x112xf32, #tpu.memory_space<vmem>>, %arg3: memref<2x112xf32, #tpu.memory_space<vmem>>) attributes {dimension_semantics = [#tpu.dimension_semantics<parallel>], iteration_bounds = array<i64: 1>, scalar_prefetch = 0 : i64, scratch_operands = 0 : i64, tpu.core_type = #tpu.core_type<tc>, window_params = [{transform_indices = @transform_0, window_bounds = array<i64: 2, 112>}, {transform_indices = @transform_1, window_bounds = array<i64: 2, 112>}, {transform_indices = @transform_2, window_bounds = array<i64: 2, 112>}]} {
    %c0 = arith.constant 0 : index
    %c0_0 = arith.constant 0 : index
    %0 = vector.load %arg1[%c0, %c0_0] : memref<2x112xf32, #tpu.memory_space<vmem>>, vector<2x112xf32>
    %1 = tpu.iota {dimensions = array<i32: 1>} : vector<1x112xi32>
    %c105_i32 = arith.constant 105 : i32
    %2 = vector.broadcast %c105_i32 : i32 to vector<1x112xi32>
    %3 = arith.cmpi sge, %1, %2 : vector<1x112xi32>
    %4 = vector.shape_cast %3 : vector<1x112xi1> to vector<1x112xi1>
    %5 = vector.broadcast %4 : vector<1x112xi1> to vector<2x112xi1>
    %c7_i32 = arith.constant 7 : i32
    %6 = vector.broadcast %c7_i32 : i32 to vector<1x112xi32>
    %7 = arith.cmpi slt, %1, %6 : vector<1x112xi32>
    %8 = vector.shape_cast %7 : vector<1x112xi1> to vector<1x112xi1>
    %9 = vector.broadcast %8 : vector<1x112xi1> to vector<2x112xi1>
    %c105_i32_1 = arith.constant 105 : i32
    %10 = tpu.dynamic_rotate %0 by %c105_i32_1 dim 1 : vector<2x112xf32>, i32 -> vector<2x112xf32>
    %11 = arith.select %5, %0, %10 : vector<2x112xi1>, vector<2x112xf32>
    %c7_i32_2 = arith.constant 7 : i32
    %12 = tpu.dynamic_rotate %0 by %c7_i32_2 dim 1 : vector<2x112xf32>, i32 -> vector<2x112xf32>
    %13 = arith.select %9, %0, %12 : vector<2x112xi1>, vector<2x112xf32>
    %14 = arith.addf %0, %11 : vector<2x112xf32>
    %15 = arith.addf %14, %13 : vector<2x112xf32>
    %c105_i32_3 = arith.constant 105 : i32
    %16 = tpu.dynamic_rotate %11 by %c105_i32_3 dim 1 : vector<2x112xf32>, i32 -> vector<2x112xf32>
    %17 = arith.select %5, %11, %16 : vector<2x112xi1>, vector<2x112xf32>
    %c7_i32_4 = arith.constant 7 : i32
    %18 = tpu.dynamic_rotate %13 by %c7_i32_4 dim 1 : vector<2x112xf32>, i32 -> vector<2x112xf32>
    %19 = arith.select %9, %13, %18 : vector<2x112xi1>, vector<2x112xf32>
    %20 = arith.addf %15, %17 : vector<2x112xf32>
    %21 = arith.addf %20, %19 : vector<2x112xf32>
    %cst = arith.constant 2.000000e-01 : f32
    %22 = vector.broadcast %cst : f32 to vector<2x112xf32>
    %23 = arith.mulf %21, %22 : vector<2x112xf32>
    %24 = arith.subf %0, %23 : vector<2x112xf32>
    %c0_5 = arith.constant 0 : index
    %c0_6 = arith.constant 0 : index
    %25 = vector.load %arg2[%c0_5, %c0_6] : memref<2x112xf32, #tpu.memory_space<vmem>>, vector<2x112xf32>
    tpu.vector_store %arg2[%c0_5, %c0_6], %24 {strides = array<i32>} : memref<2x112xf32, #tpu.memory_space<vmem>>, vector<2x112xf32>,
    %c0_7 = arith.constant 0 : index
    %c0_8 = arith.constant 0 : index
    %26 = vector.load %arg3[%c0_7, %c0_8] : memref<2x112xf32, #tpu.memory_space<vmem>>, vector<2x112xf32>
    tpu.vector_store %arg3[%c0_7, %c0_8], %23 {strides = array<i32>} : memref<2x112xf32, #tpu.memory_space<vmem>>, vector<2x112xf32>,
    return
  }
  func.func @transform_0(%arg0: i32) -> (i32, i32) {
    %c0_i32 = arith.constant 0 : i32
    %c0_i32_0 = arith.constant 0 : i32
    return %arg0, %c0_i32 : i32, i32
  }
  func.func @transform_1(%arg0: i32) -> (i32, i32) {
    %c0_i32 = arith.constant 0 : i32
    %c0_i32_0 = arith.constant 0 : i32
    return %arg0, %c0_i32 : i32, i32
  }
  func.func @transform_2(%arg0: i32) -> (i32, i32) {
    %c0_i32 = arith.constant 0 : i32
    %c0_i32_0 = arith.constant 0 : i32
    return %arg0, %c0_i32 : i32, i32
  }
}

</mosaic_0001>

<llo_original>
// kernel: tpu_custom_call.1
$region0: #{tpu_custom_call.1}
  #allocation0 [shape = 'u32[]', space=smem, size = 0x4, offset = 0x4, fixed_abs, tag = 'smem constant byte address 0x4 - core index']
  #allocation1 [shape = 'u32[72,128]{1,0:T(1,128)}', space=vmem, size = 0x9000, scoped, tag = 'internal scratch']
  %s0 = inlined_call_operand.hbm [shape: f32[2,112], index: 0, kind: input, shape index: {}]
  %s1 = inlined_call_operand.hbm [shape: f32[2,112], index: 1, kind: output, shape index: {0}]
  %s2 = inlined_call_operand.hbm [shape: f32[2,112], index: 2, kind: output, shape index: {1}]
  %3 = xla_tuple %s1, %s2
  %s4 = sld [smem:[#allocation0]]
  $region26: #{tpu_custom_call.1} parent=0
    _
  %s6 = ssub.s32 1, %s4
  %s7 = scalar_select 0, %s6, %s4
  $region1: #{tpu_custom_call.1} parent=0
    #allocation2 [shape = 'u8[1024]{0}', space=vmem, size = 0x400, scoped, tag = 'input window, operand 0, single buffered']
    #allocation3 [shape = 's32[1]{0}', space=sflag, size = 0x4, scoped, tag = 'scoped memory for tpu_custom_call.1']
    #allocation4 [shape = 's32[1]{0}', space=sflag, size = 0x4, scoped, tag = 'scoped memory for tpu_custom_call.1']
    #allocation5 [shape = 'u8[1024]{0}', space=vmem, size = 0x400, scoped, tag = 'output window, operand 0, single buffered']
    #allocation6 [shape = 'u8[1024]{0}', space=vmem, size = 0x400, scoped, tag = 'output window, operand 1, single buffered']
    #allocation7 [shape = 's32[1]{0}', space=sflag, size = 0x4, scoped, tag = 'scoped memory for tpu_custom_call.1']
    %8 = vsyncpa [#allocation3], 0
    %9 = vsyncpa [#allocation4], 0
    %10 = vsyncpa [#allocation7], 0
    // Predicated region
    $region2: #{tpu_custom_call.1} parent=1 // pred_check
      _
    $region3: #{tpu_custom_call.1} parent=1 // pred_check_branch
      %12 = sbr.rel (0) target = $region5
    $region4: #{tpu_custom_call.1} parent=1 // pred_region
      %14 = vsyncadd [#allocation3], 0
      %s16 = sshll.u32 %s0, 4
      %s17 = int_to_ptr.hbm [resolvable:$true] %s16
      %s18 = sshll.u32 [#allocation2], 4
      %s19 = int_to_ptr.vmem [resolvable:$true] %s18
      %21 = dma.hbm_to_vmem [thread:$0]  %s17, 32, %s19, [#allocation3]
    $region5: #{tpu_custom_call.1} parent=1 // pred_fallthru
      _
    // Predicated region
    $region6: #{tpu_custom_call.1} parent=1 // pred_check
      _
    $region7: #{tpu_custom_call.1} parent=1 // pred_check_branch
      %23 = sbr.rel (0) target = $region9
    $region8: #{tpu_custom_call.1} parent=1 // pred_region
      %25 = dma.done [#allocation3], 32
    $region9: #{tpu_custom_call.1} parent=1 // pred_fallthru
      _
    %v26 = vld [vmem:[#allocation2] sm:$0x3]
    %v27 = vlaneseq
    %v28 = vand.u32 %v27, 127
    %vm29 = vcmp.ge.s32.totalorder %v28, 105
    %v30 = vsel %vm29, 1, 0
    %vm31 = vcmp.eq.s32.totalorder %v30, 1
    %vm32 = vcmp.lt.s32.totalorder %v28, 7
    %v33 = vsel %vm32, 1, 0
    %vm34 = vcmp.eq.s32.totalorder %v33, 1
    %vm35 = vcmask 1048448
    %36 = vrot.lane.b32.xlu0 %v26, 112
    %v37 = vpop.permute.xlu0 %36
    %v38 = vsel %vm35, %v37, %v26
    %39 = vrot.lane.b32.xlu0 %v38, 112
    %v40 = vpop.permute.xlu0 %39
    %v41 = vsel %vm35, %v40, %v26
    %43 = vrot.lane.b32.xlu0 %v41, 121
    %v44 = vpop.permute.xlu0 %43
    %v46 = vsel %vm31, %v26, %v44
    %48 = vrot.lane.b32.xlu0 %v41, 23
    %v49 = vpop.permute.xlu0 %48
    %50 = vrot.lane.b32.xlu0 %v40, 23
    %v51 = vpop.permute.xlu0 %50
    %vm52 = vcmask 187392
    %v53 = vsel %vm52, %v49, %v51
    %v55 = vsel %vm34, %v26, %v53
    %v56 = vadd.f32 %v26, %v46
    %v57 = vadd.f32 %v56, %v55
    %58 = vrot.lane.b32.xlu0 %v46, 112
    %v59 = vpop.permute.xlu0 %58
    %v60 = vsel %vm35, %v59, %v46
    %61 = vrot.lane.b32.xlu0 %v60, 112
    %v62 = vpop.permute.xlu0 %61
    %v63 = vsel %vm35, %v62, %v46
    %65 = vrot.lane.b32.xlu0 %v63, 121
    %v66 = vpop.permute.xlu0 %65
    %v68 = vsel %vm31, %v26, %v66
    %69 = vrot.lane.b32.xlu0 %v55, 112
    %v70 = vpop.permute.xlu0 %69
    %v71 = vsel %vm35, %v70, %v55
    %72 = vrot.lane.b32.xlu0 %v71, 112
    %v73 = vpop.permute.xlu0 %72
    %v74 = vsel %vm35, %v73, %v55
    %77 = vrot.lane.b32.xlu0 %v74, 23
    %v78 = vpop.permute.xlu0 %77
    %79 = vrot.lane.b32.xlu0 %v73, 23
    %v80 = vpop.permute.xlu0 %79
    %v81 = vsel %vm52, %v78, %v80
    %v83 = vsel %vm34, %v26, %v81
    %v84 = vadd.f32 %v57, %v68
    %v85 = vadd.f32 %v84, %v83
    %v86 = vmul.f32 %v85, 0.2
    %v87 = vsub.f32 %v26, %v86
    %vm88 = vcmask 910336
    %89 = vst.msk [vmem:[#allocation5] sm:$0x3] %vm88, %v87
    %90 = vst.msk [vmem:[#allocation6] sm:$0x3] %vm88, %v86
    // Predicated region
    $region10: #{tpu_custom_call.1} parent=1 // pred_check
      _
    $region11: #{tpu_custom_call.1} parent=1 // pred_check_branch
      %92 = sbr.rel (0) target = $region13
    $region12: #{tpu_custom_call.1} parent=1 // pred_region
      %94 = vsyncadd [#allocation4], 0
      %s96 = sshll.u32 [#allocation5], 4
      %s97 = int_to_ptr.vmem [resolvable:$true] %s96
      %s98 = sshll.u32 %s1, 4
      %s99 = int_to_ptr.hbm [resolvable:$true] %s98
      %101 = dma.vmem_to_hbm [thread:$0]  %s97, 32, %s99, [#allocation4]
    $region13: #{tpu_custom_call.1} parent=1 // pred_fallthru
      _
    // Predicated region
    $region14: #{tpu_custom_call.1} parent=1 // pred_check
      _
    $region15: #{tpu_custom_call.1} parent=1 // pred_check_branch
      %103 = sbr.rel (0) target = $region17
    $region16: #{tpu_custom_call.1} parent=1 // pred_region
      %105 = vsyncadd [#allocation7], 0
      %s107 = sshll.u32 [#allocation6], 4
      %s108 = int_to_ptr.vmem [resolvable:$true] %s107
      %s109 = sshll.u32 %s2, 4
      %s110 = int_to_ptr.hbm [resolvable:$true] %s109
      %112 = dma.vmem_to_hbm [thread:$0]  %s108, 32, %s110, [#allocation7]
    $region17: #{tpu_custom_call.1} parent=1 // pred_fallthru
      _
    // Predicated region
    $region18: #{tpu_custom_call.1} parent=1 // pred_check
      _
    $region19: #{tpu_custom_call.1} parent=1 // pred_check_branch
      %114 = sbr.rel (0) target = $region21
    $region20: #{tpu_custom_call.1} parent=1 // pred_region
      %116 = dma.done [#allocation4], 32
    $region21: #{tpu_custom_call.1} parent=1 // pred_fallthru
      _
    // Predicated region
    $region22: #{tpu_custom_call.1} parent=1 // pred_check
      _
    $region23: #{tpu_custom_call.1} parent=1 // pred_check_branch
      %118 = sbr.rel (0) target = $region25
    $region24: #{tpu_custom_call.1} parent=1 // pred_region
      %120 = dma.done [#allocation7], 32
    $region25: #{tpu_custom_call.1} parent=1 // pred_fallthru
      _
    %121 = vsyncpa [#allocation3], 1
    %122 = vsyncpa [#allocation4], 1
    %123 = vsyncpa [#allocation7], 1

</llo_original>
